<compile_context>
chip_gen: v7x
topology: tpu7x:2x2x1
jax: 0.10.0
libtpu: 0.0.40
codegen_flags: <defaults>
</compile_context>

<pallas_src>
import functools
import math

import jax
import jax.numpy as jnp
from jax.experimental import pallas as pl
from jax.experimental.pallas import tpu as pltpu

_LANE = 128
_NEG_BIG = -1.0e30  # finite "-inf" for padded class logits


def _round_up(n, m):
    return ((n + m - 1) // m) * m


# --------------------------------------------------------------------------
# Kernel
# --------------------------------------------------------------------------
def _mlp_logsoftmax_kernel(x_ref, w1_ref, w23_ref, b_ref, o_ref):
    # One batch tile per grid step; weights/biases are grid-invariant tiles.
    x = x_ref[...]                                              # (TB, Dp) bf16

    # Linear 1 + ReLU (bf16 MXU operands, f32 accumulation / activations)
    h1 = jnp.dot(x, w1_ref[...], preferred_element_type=jnp.float32)
    h1 = jnp.maximum(h1 + b_ref[0:1, :], 0.0)                   # (TB, P) f32
    # TODO(synk): nn.Dropout(0.1) treated as eval-mode identity (no mask).

    # Linear 2 + ReLU
    h2 = jnp.dot(h1.astype(jnp.bfloat16), w23_ref[0],
                 preferred_element_type=jnp.float32)
    h2 = jnp.maximum(h2 + b_ref[1:2, :], 0.0)                   # (TB, P) f32
    # TODO(synk): second nn.Dropout(0.1) also eval-mode identity.

    # Linear 3 (logits). Padded class columns carry a -1e30 bias so that
    # exp(pad) underflows to exactly 0 in the softmax normalizer.
    logits = jnp.dot(h2.astype(jnp.bfloat16), w23_ref[1],
                     preferred_element_type=jnp.float32)
    logits = logits + b_ref[2:3, :]                             # (TB, P) f32

    # Numerically stable LogSoftmax over the (padded, lane-dense) class dim.
    m = jnp.max(logits, axis=-1, keepdims=True)
    z = logits - m
    lse = jnp.log(jnp.sum(jnp.exp(z), axis=-1, keepdims=True))
    o_ref[...] = (z - lse).astype(o_ref.dtype)                  # lane-dense store


# --------------------------------------------------------------------------
# One-time parameter preparation (hoisted out of the hot path)
# --------------------------------------------------------------------------
def prepare_params(params):
    """Pad/cast/stack weights once. Returns (w1_p, w23_p, b_p)."""
    w1, b1, w2, b2, w3, b3 = params
    D, H = w1.shape
    C = w3.shape[1]
    Dp = _round_up(D, _LANE)                      # 784 -> 896
    P = max(_round_up(H, _LANE), _round_up(C, _LANE))   # 64,10 -> 128

    # Zero rows/cols are exact no-ops through matmul/bias/ReLU.
    w1_p = jnp.pad(w1, ((0, Dp - D), (0, P - H))).astype(jnp.bfloat16)
    w23_p = jnp.stack([
        jnp.pad(w2, ((0, P - H), (0, P - H))),
        jnp.pad(w3, ((0, P - H), (0, P - C))),
    ]).astype(jnp.bfloat16)                                     # (2, P, P)
    b_p = jnp.stack([
        jnp.pad(b1.reshape(-1).astype(jnp.float32), (0, P - H)),
        jnp.pad(b2.reshape(-1).astype(jnp.float32), (0, P - H)),
        jnp.pad(b3.reshape(-1).astype(jnp.float32), (0, P - C),
                constant_values=_NEG_BIG),
    ]).astype(jnp.float32)                                      # (3, P)
    return w1_p, w23_p, b_p


# --------------------------------------------------------------------------
# Jitted forward
# --------------------------------------------------------------------------
@functools.partial(jax.jit, static_argnames=("num_classes",))
def simple_network_forward(x_nchw, w1_p, w23_p, b_p, *, num_classes):
    """x_nchw: (B, C, H, W) float32. Returns (B, num_classes) log-probs."""
    B = x_nchw.shape[0]
    Dp, P = w1_p.shape
    D = x_nchw.shape[1] * x_nchw.shape[2] * x_nchw.shape[3]

    # Batch tiling: one grid step per TB rows; weights stay VMEM-resident.
    Bp = _round_up(B, 8)
    if Bp > 256:
        TB = 256
        Bp = _round_up(B, TB)
    else:
        TB = Bp
    nb = Bp // TB

    # nn.Flatten() + pad feature dim to the lane-aligned Dp; pad batch to Bp.
    x_flat = x_nchw.reshape(B, D).astype(jnp.bfloat16)
    x_p = jnp.pad(x_flat, ((0, Bp - B), (0, Dp - D)))

    cost = pl.CostEstimate(
        flops=2 * Bp * (Dp * P + 2 * P * P),
        transcendentals=Bp * (P + 1),
        bytes_accessed=(x_p.size * 2 + w1_p.size * 2 + w23_p.size * 2
                        + b_p.size * 4 + Bp * P * 4),
    )

    out_padded = pl.pallas_call(
        _mlp_logsoftmax_kernel,
        out_shape=jax.ShapeDtypeStruct((Bp, P), jnp.float32),
        grid=(nb,),
        in_specs=[
            pl.BlockSpec((TB, Dp), lambda i: (i, 0)),       # x: batch-tiled
            pl.BlockSpec((Dp, P), lambda i: (0, 0)),        # w1: resident
            pl.BlockSpec((2, P, P), lambda i: (0, 0, 0)),   # w2/w3: resident
            pl.BlockSpec((3, P), lambda i: (0, 0)),         # biases: resident
        ],
        out_specs=pl.BlockSpec((TB, P), lambda i: (i, 0)),
        compiler_params=pltpu.CompilerParams(
            dimension_semantics=("parallel",)),
        cost_estimate=cost,
    )(x_p, w1_p, w23_p, b_p)

    return out_padded[:B, :num_classes]


# --------------------------------------------------------------------------
# Init / reference
# --------------------------------------------------------------------------
def init_params(key, in_features, hidden_size, num_classes):
    """Deterministic PyTorch-style (Kaiming-uniform-ish) Linear init."""
    def linear(k, fan_in, fan_out):
        kw, kb = jax.random.split(k)
        bound = 1.0 / math.sqrt(fan_in)
        # stored as (in, out) so the kernel computes x @ W
        w = jax.random.uniform(kw, (fan_in, fan_out), jnp.float32, -bound, bound)
        b = jax.random.uniform(kb, (1, fan_out), jnp.float32, -bound, bound)
        return w, b

    k1, k2, k3 = jax.random.split(key, 3)
    w1, b1 = linear(k1, in_features, hidden_size)
    w2, b2 = linear(k2, hidden_size, hidden_size)
    w3, b3 = linear(k3, hidden_size, num_classes)
    return (w1, b1, w2, b2, w3, b3)


def _reference_forward(x_nchw, params):
    """Pure-JAX f32 reference (eval-mode dropout)."""
    w1, b1, w2, b2, w3, b3 = params
    B = x_nchw.shape[0]
    x = x_nchw.reshape(B, -1).astype(jnp.float32)
    h1 = jnp.maximum(x @ w1 + b1, 0.0)
    h2 = jnp.maximum(h1 @ w2 + b2, 0.0)
    logits = h2 @ w3 + b3
    return jax.nn.log_softmax(logits, axis=-1)


if __name__ == "__main__":
    # Module defaults: input_shape=(1, 28, 28), hidden_size=64, num_classes=10
    batch = 8
    channels, height, width = 1, 28, 28
    hidden_size = 64
    num_classes = 10
    in_features = channels * height * width  # 784

    key = jax.random.PRNGKey(0)
    kx, kp = jax.random.split(key)
    x = jax.random.normal(kx, (batch, channels, height, width), jnp.float32)
    params = init_params(kp, in_features, hidden_size, num_classes)

    # One-time weight prep (outside the per-call hot path).
    w1_p, w23_p, b_p = jax.block_until_ready(prepare_params(params))

    out = simple_network_forward(x, w1_p, w23_p, b_p, num_classes=num_classes)
    out = jax.block_until_ready(out)

    assert out.shape == (batch, num_classes)
    # log-softmax rows should (approximately) exponentiate-sum to 1
    row_sums = jnp.sum(jnp.exp(out), axis=1)
    assert bool(jnp.all(jnp.abs(row_sums - 1.0) < 1e-4))
    # loose check against an f32 pure-JAX reference (kernel uses bf16 MXU)
    ref = _reference_forward(x, params)
    assert bool(jnp.all(jnp.abs(out - ref) < 5e-2))

    print("KERNEL_OK")
</pallas_src>

<mosaic_0001>
module attributes {stable_mosaic.version = 11 : i64} {
  func.func @_mlp_logsoftmax_kernel(%arg0: i32, %arg1: memref<8x896xbf16, #tpu.memory_space<vmem>>, %arg2: memref<896x128xbf16, #tpu.memory_space<vmem>>, %arg3: memref<2x128x128xbf16, #tpu.memory_space<vmem>>, %arg4: memref<3x128xf32, #tpu.memory_space<vmem>>, %arg5: memref<8x128xf32, #tpu.memory_space<vmem>>) attributes {dimension_semantics = [#tpu.dimension_semantics<parallel>], iteration_bounds = array<i64: 1>, scalar_prefetch = 0 : i64, scratch_operands = 0 : i64, tpu.core_type = #tpu.core_type<tc>, window_params = [{transform_indices = @transform_0, window_bounds = array<i64: 8, 896>}, {pipeline_mode = #tpu.pipeline_mode<synchronous>, transform_indices = @transform_1, window_bounds = array<i64: 896, 128>}, {pipeline_mode = #tpu.pipeline_mode<synchronous>, transform_indices = @transform_2, window_bounds = array<i64: 2, 128, 128>}, {pipeline_mode = #tpu.pipeline_mode<synchronous>, transform_indices = @transform_3, window_bounds = array<i64: 3, 128>}, {transform_indices = @transform_4, window_bounds = array<i64: 8, 128>}]} {
    %c0 = arith.constant 0 : index
    %c0_0 = arith.constant 0 : index
    %0 = vector.load %arg1[%c0, %c0_0] : memref<8x896xbf16, #tpu.memory_space<vmem>>, vector<8x896xbf16>
    %c0_1 = arith.constant 0 : index
    %c0_2 = arith.constant 0 : index
    %1 = vector.load %arg2[%c0_1, %c0_2] : memref<896x128xbf16, #tpu.memory_space<vmem>>, vector<896x128xbf16>
    %cst = arith.constant dense<0.000000e+00> : vector<8x128xf32>
    %2 = tpu.matmul %0, %1, %cst {dimension_numbers = #tpu.dot_dimension_numbers<[1], [0], [0], [1], [0, 0, 1, 1], [], []>} : vector<8x896xbf16>, vector<896x128xbf16>, vector<8x128xf32> -> vector<8x128xf32>
    %c0_3 = arith.constant 0 : index
    %c0_4 = arith.constant 0 : index
    %3 = vector.load %arg4[%c0_3, %c0_4] : memref<3x128xf32, #tpu.memory_space<vmem>>, vector<1x128xf32>
    %4 = vector.broadcast %3 : vector<1x128xf32> to vector<8x128xf32>
    %5 = arith.addf %2, %4 : vector<8x128xf32>
    %cst_5 = arith.constant 0.000000e+00 : f32
    %6 = vector.broadcast %cst_5 : f32 to vector<8x128xf32>
    %7 = arith.maximumf %5, %6 : vector<8x128xf32>
    %8 = arith.truncf %7 : vector<8x128xf32> to vector<8x128xbf16>
    %c0_6 = arith.constant 0 : index
    %c0_7 = arith.constant 0 : index
    %c0_8 = arith.constant 0 : index
    %9 = vector.load %arg3[%c0_6, %c0_7, %c0_8] : memref<2x128x128xbf16, #tpu.memory_space<vmem>>, vector<1x128x128xbf16>
    %10 = vector.shape_cast %9 : vector<1x128x128xbf16> to vector<128x128xbf16>
    %cst_9 = arith.constant dense<0.000000e+00> : vector<8x128xf32>
    %11 = tpu.matmul %8, %10, %cst_9 {dimension_numbers = #tpu.dot_dimension_numbers<[1], [0], [0], [1], [0, 0, 1, 1], [], []>} : vector<8x128xbf16>, vector<128x128xbf16>, vector<8x128xf32> -> vector<8x128xf32>
    %c1 = arith.constant 1 : index
    %c0_10 = arith.constant 0 : index
    %12 = vector.load %arg4[%c1, %c0_10] : memref<3x128xf32, #tpu.memory_space<vmem>>, vector<1x128xf32>
    %13 = vector.broadcast %12 : vector<1x128xf32> to vector<8x128xf32>
    %14 = arith.addf %11, %13 : vector<8x128xf32>
    %cst_11 = arith.constant 0.000000e+00 : f32
    %15 = vector.broadcast %cst_11 : f32 to vector<8x128xf32>
    %16 = arith.maximumf %14, %15 : vector<8x128xf32>
    %17 = arith.truncf %16 : vector<8x128xf32> to vector<8x128xbf16>
    %c1_12 = arith.constant 1 : index
    %c0_13 = arith.constant 0 : index
    %c0_14 = arith.constant 0 : index
    %18 = vector.load %arg3[%c1_12, %c0_13, %c0_14] : memref<2x128x128xbf16, #tpu.memory_space<vmem>>, vector<1x128x128xbf16>
    %19 = vector.shape_cast %18 : vector<1x128x128xbf16> to vector<128x128xbf16>
    %cst_15 = arith.constant dense<0.000000e+00> : vector<8x128xf32>
    %20 = tpu.matmul %17, %19, %cst_15 {dimension_numbers = #tpu.dot_dimension_numbers<[1], [0], [0], [1], [0, 0, 1, 1], [], []>} : vector<8x128xbf16>, vector<128x128xbf16>, vector<8x128xf32> -> vector<8x128xf32>
    %c2 = arith.constant 2 : index
    %c0_16 = arith.constant 0 : index
    %21 = vector.load %arg4[%c2, %c0_16] : memref<3x128xf32, #tpu.memory_space<vmem>>, vector<1x128xf32>
    %22 = vector.broadcast %21 : vector<1x128xf32> to vector<8x128xf32>
    %23 = arith.addf %20, %22 : vector<8x128xf32>
    %cst_17 = arith.constant dense<0xFF800000> : vector<8xf32>
    %24 = vector.multi_reduction <maximumf>, %23, %cst_17 [1] : vector<8x128xf32> to vector<8xf32>
    %25 = vector.shape_cast %24 : vector<8xf32> to vector<8x1xf32>
    %26 = vector.broadcast %25 : vector<8x1xf32> to vector<8x128xf32>
    %27 = arith.subf %23, %26 : vector<8x128xf32>
    %28 = math.exp %27 : vector<8x128xf32>
    %cst_18 = arith.constant dense<0.000000e+00> : vector<8xf32>
    %29 = vector.multi_reduction <add>, %28, %cst_18 [1] : vector<8x128xf32> to vector<8xf32>
    %30 = vector.shape_cast %29 : vector<8xf32> to vector<8x1xf32>
    %31 = math.log %30 : vector<8x1xf32>
    %32 = vector.broadcast %31 : vector<8x1xf32> to vector<8x128xf32>
    %33 = arith.subf %27, %32 : vector<8x128xf32>
    %c0_19 = arith.constant 0 : index
    %c0_20 = arith.constant 0 : index
    %34 = vector.load %arg5[%c0_19, %c0_20] : memref<8x128xf32, #tpu.memory_space<vmem>>, vector<8x128xf32>
    tpu.vector_store %arg5[%c0_19, %c0_20], %33 {strides = array<i32>} : memref<8x128xf32, #tpu.memory_space<vmem>>, vector<8x128xf32>,
    return
  }
  func.func @transform_0(%arg0: i32) -> (i32, i32) {
    %c0_i32 = arith.constant 0 : i32
    %c0_i32_0 = arith.constant 0 : i32
    return %arg0, %c0_i32 : i32, i32
  }
  func.func @transform_1(%arg0: i32) -> (i32, i32) {
    %c0_i32 = arith.constant 0 : i32
    %c0_i32_0 = arith.constant 0 : i32
    %c0_i32_1 = arith.constant 0 : i32
    return %c0_i32, %c0_i32_0 : i32, i32
  }
  func.func @transform_2(%arg0: i32) -> (i32, i32, i32) {
    %c0_i32 = arith.constant 0 : i32
    %c0_i32_0 = arith.constant 0 : i32
    %c0_i32_1 = arith.constant 0 : i32
    %c0_i32_2 = arith.constant 0 : i32
    return %c0_i32, %c0_i32_0, %c0_i32_1 : i32, i32, i32
  }
  func.func @transform_3(%arg0: i32) -> (i32, i32) {
    %c0_i32 = arith.constant 0 : i32
    %c0_i32_0 = arith.constant 0 : i32
    %c0_i32_1 = arith.constant 0 : i32
    return %c0_i32, %c0_i32_0 : i32, i32
  }
  func.func @transform_4(%arg0: i32) -> (i32, i32) {
    %c0_i32 = arith.constant 0 : i32
    %c0_i32_0 = arith.constant 0 : i32
    return %arg0, %c0_i32 : i32, i32
  }
}

</mosaic_0001>

<llo_original>
// kernel: simple_network_forward.1
$region0: #{simple_network_forward.1}
  #allocation0 [shape = 'u32[]', space=smem, size = 0x4, offset = 0x4, fixed_abs, tag = 'smem constant byte address 0x4 - core index']
  #allocation1 [shape = 'u32[144,128]{1,0:T(1,128)}', space=vmem, size = 0x12000, scoped, tag = 'internal scratch']
  %s0 = inlined_call_operand.vmem [shape: bf16[8,896], index: 0, kind: input, shape index: {}]
  %s1 = inlined_call_operand.vmem [shape: bf16[896,128], index: 1, kind: input, shape index: {}]
  %s2 = inlined_call_operand.hbm [shape: bf16[2,128,128], index: 2, kind: input, shape index: {}]
  %s3 = inlined_call_operand.vmem [shape: f32[3,128], index: 3, kind: input, shape index: {}]
  %s4 = inlined_call_operand.hbm [shape: f32[8,128], index: 4, kind: output, shape index: {}]
  %s5 = sld [smem:[#allocation0]]
  $region30: #{simple_network_forward.1} parent=0
    _
  %s7 = ssub.s32 1, %s5
  %s8 = scalar_select 0, %s7, %s5
  $region1: #{simple_network_forward.1} parent=0
    #allocation2 [shape = 'u8[65536]{0}', space=vmem, size = 0x10000, scoped, tag = 'input window, operand 2, single buffered']
    #allocation3 [shape = 's32[1]{0}', space=sflag, size = 0x4, scoped, tag = 'scoped memory for simple_network_forward.1']
    #allocation4 [shape = 's32[1]{0}', space=sflag, size = 0x4, scoped, tag = 'scoped memory for simple_network_forward.1']
    #allocation5 [shape = 'u8[4096]{0}', space=vmem, size = 0x1000, scoped, tag = 'output window, operand 0, single buffered']
    %9 = vsyncpa [#allocation3], 0
    %10 = vsyncpa [#allocation4], 0
    // Predicated region
    $region2: #{simple_network_forward.1} parent=1 // pred_check
      _
    $region3: #{simple_network_forward.1} parent=1 // pred_check_branch
      %12 = sbr.rel (0) target = $region5
    $region4: #{simple_network_forward.1} parent=1 // pred_region
      _
    $region5: #{simple_network_forward.1} parent=1 // pred_fallthru
      _
    // Predicated region
    $region6: #{simple_network_forward.1} parent=1 // pred_check
      _
    $region7: #{simple_network_forward.1} parent=1 // pred_check_branch
      %14 = sbr.rel (0) target = $region9
    $region8: #{simple_network_forward.1} parent=1 // pred_region
      _
    $region9: #{simple_network_forward.1} parent=1 // pred_fallthru
      _
    // Predicated region
    $region10: #{simple_network_forward.1} parent=1 // pred_check
      _
    $region11: #{simple_network_forward.1} parent=1 // pred_check_branch
      %16 = sbr.rel (0) target = $region13
    $region12: #{simple_network_forward.1} parent=1 // pred_region
      %s18 = ssub.s32 2048, 2048
      %19 = vsyncadd [#allocation3], %s18
      %s20 = sshll.u32 [#allocation2], 4
      %s21 = int_to_ptr.vmem [resolvable:$true] %s20
      %26 = dma.hbm_to_vmem [thread:$0]  %s2, 2048, %s21, [#allocation3], 64, 64, 4
    $region13: #{simple_network_forward.1} parent=1 // pred_fallthru
      _
    // Predicated region
    $region14: #{simple_network_forward.1} parent=1 // pred_check
      _
    $region15: #{simple_network_forward.1} parent=1 // pred_check_branch
      %28 = sbr.rel (0) target = $region17
    $region16: #{simple_network_forward.1} parent=1 // pred_region
      _
    $region17: #{simple_network_forward.1} parent=1 // pred_fallthru
      _
    // Predicated region
    $region18: #{simple_network_forward.1} parent=1 // pred_check
      _
    $region19: #{simple_network_forward.1} parent=1 // pred_check_branch
      %30 = sbr.rel (0) target = $region21
    $region20: #{simple_network_forward.1} parent=1 // pred_region
      %31 = dma.done [#allocation3], 2048
    $region21: #{simple_network_forward.1} parent=1 // pred_fallthru
      _
    %v33 = vld [vmem:[%s0] sm:$0xff]
    %v34 = vld [vmem:[%s0 + $0x8] sm:$0xff]
    %v35 = vld [vmem:[%s0 + $0x10] sm:$0xff]
    %v36 = vld [vmem:[%s0 + $0x18] sm:$0xf]
    %v37 = vld [vmem:[%s1] sm:$0xf]
    %v38 = vld [vmem:[%s1 + $0x4] sm:$0xf]
    %v39 = vld [vmem:[%s1 + $0x8] sm:$0xf]
    %v40 = vld [vmem:[%s1 + $0xc] sm:$0xf]
    %v41 = vld [vmem:[%s1 + $0x10] sm:$0xf]
    %v42 = vld [vmem:[%s1 + $0x14] sm:$0xf]
    %v43 = vld [vmem:[%s1 + $0x18] sm:$0xf]
    %v44 = vld [vmem:[%s1 + $0x1c] sm:$0xf]
    %v45 = vld [vmem:[%s1 + $0x20] sm:$0xf]
    %v46 = vld [vmem:[%s1 + $0x24] sm:$0xf]
    %v47 = vld [vmem:[%s1 + $0x28] sm:$0xf]
    %v48 = vld [vmem:[%s1 + $0x2c] sm:$0xf]
    %v49 = vld [vmem:[%s1 + $0x30] sm:$0xf]
    %v50 = vld [vmem:[%s1 + $0x34] sm:$0xf]
    %v51 = vld [vmem:[%s1 + $0x38] sm:$0xf]
    %v52 = vld [vmem:[%s1 + $0x3c] sm:$0xf]
    %v53 = vld [vmem:[%s1 + $0x40] sm:$0xf]
    %v54 = vld [vmem:[%s1 + $0x44] sm:$0xf]
    %v55 = vld [vmem:[%s1 + $0x48] sm:$0xf]
    %v56 = vld [vmem:[%s1 + $0x4c] sm:$0xf]
    %v57 = vld [vmem:[%s1 + $0x50] sm:$0xf]
    %v58 = vld [vmem:[%s1 + $0x54] sm:$0xf]
    %v59 = vld [vmem:[%s1 + $0x58] sm:$0xf]
    %v60 = vld [vmem:[%s1 + $0x5c] sm:$0xf]
    %v61 = vld [vmem:[%s1 + $0x60] sm:$0xf]
    %v62 = vld [vmem:[%s1 + $0x64] sm:$0xf]
    %v63 = vld [vmem:[%s1 + $0x68] sm:$0xf]
    %v64 = vld [vmem:[%s1 + $0x6c] sm:$0xf]
    %v65 = vld [vmem:[%s1 + $0x70] sm:$0xf]
    %v66 = vld [vmem:[%s1 + $0x74] sm:$0xf]
    %v67 = vld [vmem:[%s1 + $0x78] sm:$0xf]
    %v68 = vld [vmem:[%s1 + $0x7c] sm:$0xf]
    %v69 = vld [vmem:[%s1 + $0x80] sm:$0xf]
    %v70 = vld [vmem:[%s1 + $0x84] sm:$0xf]
    %v71 = vld [vmem:[%s1 + $0x88] sm:$0xf]
    %v72 = vld [vmem:[%s1 + $0x8c] sm:$0xf]
    %v73 = vld [vmem:[%s1 + $0x90] sm:$0xf]
    %v74 = vld [vmem:[%s1 + $0x94] sm:$0xf]
    %v75 = vld [vmem:[%s1 + $0x98] sm:$0xf]
    %v76 = vld [vmem:[%s1 + $0x9c] sm:$0xf]
    %v77 = vld [vmem:[%s1 + $0xa0] sm:$0xf]
    %v78 = vld [vmem:[%s1 + $0xa4] sm:$0xf]
    %v79 = vld [vmem:[%s1 + $0xa8] sm:$0xf]
    %v80 = vld [vmem:[%s1 + $0xac] sm:$0xf]
    %v81 = vld [vmem:[%s1 + $0xb0] sm:$0xf]
    %v82 = vld [vmem:[%s1 + $0xb4] sm:$0xf]
    %v83 = vld [vmem:[%s1 + $0xb8] sm:$0xf]
    %v84 = vld [vmem:[%s1 + $0xbc] sm:$0xf]
    %v85 = vld [vmem:[%s1 + $0xc0] sm:$0xf]
    %v86 = vld [vmem:[%s1 + $0xc4] sm:$0xf]
    %v87 = vld [vmem:[%s1 + $0xc8] sm:$0xf]
    %v88 = vld [vmem:[%s1 + $0xcc] sm:$0xf]
    %v89 = vld [vmem:[%s1 + $0xd0] sm:$0xf]
    %v90 = vld [vmem:[%s1 + $0xd4] sm:$0xf]
    %v91 = vld [vmem:[%s1 + $0xd8] sm:$0xf]
    %v92 = vld [vmem:[%s1 + $0xdc] sm:$0xf]
    %v93 = vld [vmem:[%s1 + $0xe0] sm:$0xf]
    %v94 = vld [vmem:[%s1 + $0xe4] sm:$0xf]
    %v95 = vld [vmem:[%s1 + $0xe8] sm:$0xf]
    %v96 = vld [vmem:[%s1 + $0xec] sm:$0xf]
    %v97 = vld [vmem:[%s1 + $0xf0] sm:$0xf]
    %v98 = vld [vmem:[%s1 + $0xf4] sm:$0xf]
    %v99 = vld [vmem:[%s1 + $0xf8] sm:$0xf]
    %v100 = vld [vmem:[%s1 + $0xfc] sm:$0xf]
    %v101 = vld [vmem:[%s1 + $0x100] sm:$0xf]
    %v102 = vld [vmem:[%s1 + $0x104] sm:$0xf]
    %v103 = vld [vmem:[%s1 + $0x108] sm:$0xf]
    %v104 = vld [vmem:[%s1 + $0x10c] sm:$0xf]
    %v105 = vld [vmem:[%s1 + $0x110] sm:$0xf]
    %v106 = vld [vmem:[%s1 + $0x114] sm:$0xf]
    %v107 = vld [vmem:[%s1 + $0x118] sm:$0xf]
    %v108 = vld [vmem:[%s1 + $0x11c] sm:$0xf]
    %v109 = vld [vmem:[%s1 + $0x120] sm:$0xf]
    %v110 = vld [vmem:[%s1 + $0x124] sm:$0xf]
    %v111 = vld [vmem:[%s1 + $0x128] sm:$0xf]
    %v112 = vld [vmem:[%s1 + $0x12c] sm:$0xf]
    %v113 = vld [vmem:[%s1 + $0x130] sm:$0xf]
    %v114 = vld [vmem:[%s1 + $0x134] sm:$0xf]
    %v115 = vld [vmem:[%s1 + $0x138] sm:$0xf]
    %v116 = vld [vmem:[%s1 + $0x13c] sm:$0xf]
    %v117 = vld [vmem:[%s1 + $0x140] sm:$0xf]
    %v118 = vld [vmem:[%s1 + $0x144] sm:$0xf]
    %v119 = vld [vmem:[%s1 + $0x148] sm:$0xf]
    %v120 = vld [vmem:[%s1 + $0x14c] sm:$0xf]
    %v121 = vld [vmem:[%s1 + $0x150] sm:$0xf]
    %v122 = vld [vmem:[%s1 + $0x154] sm:$0xf]
    %v123 = vld [vmem:[%s1 + $0x158] sm:$0xf]
    %v124 = vld [vmem:[%s1 + $0x15c] sm:$0xf]
    %v125 = vld [vmem:[%s1 + $0x160] sm:$0xf]
    %v126 = vld [vmem:[%s1 + $0x164] sm:$0xf]
    %v127 = vld [vmem:[%s1 + $0x168] sm:$0xf]
    %v128 = vld [vmem:[%s1 + $0x16c] sm:$0xf]
    %v129 = vld [vmem:[%s1 + $0x170] sm:$0xf]
    %v130 = vld [vmem:[%s1 + $0x174] sm:$0xf]
    %v131 = vld [vmem:[%s1 + $0x178] sm:$0xf]
    %v132 = vld [vmem:[%s1 + $0x17c] sm:$0xf]
    %v133 = vld [vmem:[%s1 + $0x180] sm:$0xf]
    %v134 = vld [vmem:[%s1 + $0x184] sm:$0xf]
    %v135 = vld [vmem:[%s1 + $0x188] sm:$0xf]
    %v136 = vld [vmem:[%s1 + $0x18c] sm:$0xf]
    %v137 = vld [vmem:[%s1 + $0x190] sm:$0xf]
    %v138 = vld [vmem:[%s1 + $0x194] sm:$0xf]
    %v139 = vld [vmem:[%s1 + $0x198] sm:$0xf]
    %v140 = vld [vmem:[%s1 + $0x19c] sm:$0xf]
    %v141 = vld [vmem:[%s1 + $0x1a0] sm:$0xf]
    %v142 = vld [vmem:[%s1 + $0x1a4] sm:$0xf]
    %v143 = vld [vmem:[%s1 + $0x1a8] sm:$0xf]
    %v144 = vld [vmem:[%s1 + $0x1ac] sm:$0xf]
    %v145 = vld [vmem:[%s1 + $0x1b0] sm:$0xf]
    %v146 = vld [vmem:[%s1 + $0x1b4] sm:$0xf]
    %v147 = vld [vmem:[%s1 + $0x1b8] sm:$0xf]
    %v148 = vld [vmem:[%s1 + $0x1bc] sm:$0xf]
    %v149 = vld [vmem:[%s3] sm:$0x1]
    %v150 = vlaneseq
    %v151 = vshrl.u32 %v150, 7
    %v152 = vsub.s32 0, %v151
    %v153 = vrot.slane %v149, %v152
    %v158 = vunpack.c.l.b16 %v33
    %v159 = vunpack.c.h.b16 %v33
    %v160 = vunpack.c.l.b16 %v34
    %v161 = vunpack.c.h.b16 %v34
    %v162 = vunpack.c.l.b16 %v35
    %v163 = vunpack.c.h.b16 %v35
    %v164 = vunpack.c.l.b16 %v36
    %v165 = vpack.c.b16 %v158, %v158
    %v166 = vpack.c.b16 %v159, %v159
    %v167 = vpack.c.b16 %v160, %v160
    %v168 = vpack.c.b16 %v161, %v161
    %v169 = vpack.c.b16 %v162, %v162
    %v170 = vpack.c.b16 %v163, %v163
    %v171 = vpack.c.b16 %v164, %v164
    %v291 = vunpack.c.l.b16 %v37
    %v292 = vunpack.c.l.b16 %v38
    %v293 = vunpack.c.l.b16 %v39
    %v294 = vunpack.c.l.b16 %v40
    %v295 = vunpack.c.l.b16 %v41
    %v296 = vunpack.c.l.b16 %v42
    %v297 = vunpack.c.l.b16 %v43
    %v298 = vunpack.c.l.b16 %v44
    %v299 = vunpack.c.l.b16 %v45
    %v300 = vunpack.c.l.b16 %v46
    %v301 = vunpack.c.l.b16 %v47
    %v302 = vunpack.c.l.b16 %v48
    %v303 = vunpack.c.l.b16 %v49
    %v304 = vunpack.c.l.b16 %v50
    %v305 = vunpack.c.l.b16 %v51
    %v306 = vunpack.c.l.b16 %v52
    %v307 = vunpack.c.l.b16 %v53
    %v308 = vunpack.c.l.b16 %v54
    %v309 = vunpack.c.l.b16 %v55
    %v310 = vunpack.c.l.b16 %v56
    %v311 = vunpack.c.l.b16 %v57
    %v312 = vunpack.c.l.b16 %v58
    %v313 = vunpack.c.l.b16 %v59
    %v314 = vunpack.c.l.b16 %v60
    %v315 = vunpack.c.l.b16 %v61
    %v316 = vunpack.c.l.b16 %v62
    %v317 = vunpack.c.l.b16 %v63
    %v318 = vunpack.c.l.b16 %v64
    %v319 = vunpack.c.l.b16 %v65
    %v320 = vunpack.c.l.b16 %v66
    %v321 = vunpack.c.l.b16 %v67
    %v322 = vunpack.c.l.b16 %v68
    %v323 = vunpack.c.l.b16 %v69
    %v324 = vunpack.c.l.b16 %v70
    %v325 = vunpack.c.l.b16 %v71
    %v326 = vunpack.c.l.b16 %v72
    %v327 = vunpack.c.l.b16 %v73
    %v328 = vunpack.c.l.b16 %v74
    %v329 = vunpack.c.l.b16 %v75
    %v330 = vunpack.c.l.b16 %v76
    %v331 = vunpack.c.l.b16 %v77
    %v332 = vunpack.c.l.b16 %v78
    %v333 = vunpack.c.l.b16 %v79
    %v334 = vunpack.c.l.b16 %v80
    %v335 = vunpack.c.l.b16 %v81
    %v336 = vunpack.c.l.b16 %v82
    %v337 = vunpack.c.l.b16 %v83
    %v338 = vunpack.c.l.b16 %v84
    %v339 = vunpack.c.l.b16 %v85
    %v340 = vunpack.c.l.b16 %v86
    %v341 = vunpack.c.l.b16 %v87
    %v342 = vunpack.c.l.b16 %v88
    %v343 = vunpack.c.l.b16 %v89
    %v344 = vunpack.c.l.b16 %v90
    %v345 = vunpack.c.l.b16 %v91
    %v346 = vunpack.c.l.b16 %v92
    %v347 = vunpack.c.l.b16 %v93
    %v348 = vunpack.c.l.b16 %v94
    %v349 = vunpack.c.l.b16 %v95
    %v350 = vunpack.c.l.b16 %v96
    %v351 = vunpack.c.l.b16 %v97
    %v352 = vunpack.c.l.b16 %v98
    %v353 = vunpack.c.l.b16 %v99
    %v354 = vunpack.c.l.b16 %v100
    %v355 = vunpack.c.l.b16 %v101
    %v356 = vunpack.c.l.b16 %v102
    %v357 = vunpack.c.l.b16 %v103
    %v358 = vunpack.c.l.b16 %v104
    %v359 = vunpack.c.l.b16 %v105
    %v360 = vunpack.c.l.b16 %v106
    %v361 = vunpack.c.l.b16 %v107
    %v362 = vunpack.c.l.b16 %v108
    %v363 = vunpack.c.l.b16 %v109
    %v364 = vunpack.c.l.b16 %v110
    %v365 = vunpack.c.l.b16 %v111
    %v366 = vunpack.c.l.b16 %v112
    %v367 = vunpack.c.l.b16 %v113
    %v368 = vunpack.c.l.b16 %v114
    %v369 = vunpack.c.l.b16 %v115
    %v370 = vunpack.c.l.b16 %v116
    %v371 = vunpack.c.l.b16 %v117
    %v372 = vunpack.c.l.b16 %v118
    %v373 = vunpack.c.l.b16 %v119
    %v374 = vunpack.c.l.b16 %v120
    %v375 = vunpack.c.l.b16 %v121
    %v376 = vunpack.c.l.b16 %v122
    %v377 = vunpack.c.l.b16 %v123
    %v378 = vunpack.c.l.b16 %v124
    %v379 = vunpack.c.l.b16 %v125
    %v380 = vunpack.c.l.b16 %v126
    %v381 = vunpack.c.l.b16 %v127
    %v382 = vunpack.c.l.b16 %v128
    %v383 = vunpack.c.l.b16 %v129
    %v384 = vunpack.c.l.b16 %v130
    %v385 = vunpack.c.l.b16 %v131
    %v386 = vunpack.c.l.b16 %v132
    %v387 = vunpack.c.l.b16 %v133
    %v388 = vunpack.c.l.b16 %v134
    %v389 = vunpack.c.l.b16 %v135
    %v390 = vunpack.c.l.b16 %v136
    %v391 = vunpack.c.l.b16 %v137
    %v392 = vunpack.c.l.b16 %v138
    %v393 = vunpack.c.l.b16 %v139
    %v394 = vunpack.c.l.b16 %v140
    %v395 = vunpack.c.l.b16 %v141
    %v396 = vunpack.c.l.b16 %v142
    %v397 = vunpack.c.l.b16 %v143
    %v398 = vunpack.c.l.b16 %v144
    %v399 = vunpack.c.l.b16 %v145
    %v400 = vunpack.c.l.b16 %v146
    %v401 = vunpack.c.l.b16 %v147
    %v402 = vunpack.c.l.b16 %v148
    %v403 = vpack.c.b16 %v292, %v291
    %v404 = vpack.c.b16 %v294, %v293
    %v405 = vpack.c.b16 %v296, %v295
    %v406 = vpack.c.b16 %v298, %v297
    %v407 = vpack.c.b16 %v300, %v299
    %v408 = vpack.c.b16 %v302, %v301
    %v409 = vpack.c.b16 %v304, %v303
    %v410 = vpack.c.b16 %v306, %v305
    %v411 = vpack.c.b16 %v308, %v307
    %v412 = vpack.c.b16 %v310, %v309
    %v413 = vpack.c.b16 %v312, %v311
    %v414 = vpack.c.b16 %v314, %v313
    %v415 = vpack.c.b16 %v316, %v315
    %v416 = vpack.c.b16 %v318, %v317
    %v417 = vpack.c.b16 %v320, %v319
    %v418 = vpack.c.b16 %v322, %v321
    %v419 = vpack.c.b16 %v324, %v323
    %v420 = vpack.c.b16 %v326, %v325
    %v421 = vpack.c.b16 %v328, %v327
    %v422 = vpack.c.b16 %v330, %v329
    %v423 = vpack.c.b16 %v332, %v331
    %v424 = vpack.c.b16 %v334, %v333
    %v425 = vpack.c.b16 %v336, %v335
    %v426 = vpack.c.b16 %v338, %v337
    %v427 = vpack.c.b16 %v340, %v339
    %v428 = vpack.c.b16 %v342, %v341
    %v429 = vpack.c.b16 %v344, %v343
    %v430 = vpack.c.b16 %v346, %v345
    %v431 = vpack.c.b16 %v348, %v347
    %v432 = vpack.c.b16 %v350, %v349
    %v433 = vpack.c.b16 %v352, %v351
    %v434 = vpack.c.b16 %v354, %v353
    %v435 = vpack.c.b16 %v356, %v355
    %v436 = vpack.c.b16 %v358, %v357
    %v437 = vpack.c.b16 %v360, %v359
    %v438 = vpack.c.b16 %v362, %v361
    %v439 = vpack.c.b16 %v364, %v363
    %v440 = vpack.c.b16 %v366, %v365
    %v441 = vpack.c.b16 %v368, %v367
    %v442 = vpack.c.b16 %v370, %v369
    %v443 = vpack.c.b16 %v372, %v371
    %v444 = vpack.c.b16 %v374, %v373
    %v445 = vpack.c.b16 %v376, %v375
    %v446 = vpack.c.b16 %v378, %v377
    %v447 = vpack.c.b16 %v380, %v379
    %v448 = vpack.c.b16 %v382, %v381
    %v449 = vpack.c.b16 %v384, %v383
    %v450 = vpack.c.b16 %v386, %v385
    %v451 = vpack.c.b16 %v388, %v387
    %v452 = vpack.c.b16 %v390, %v389
    %v453 = vpack.c.b16 %v392, %v391
    %v454 = vpack.c.b16 %v394, %v393
    %v455 = vpack.c.b16 %v396, %v395
    %v456 = vpack.c.b16 %v398, %v397
    %v457 = vpack.c.b16 %v400, %v399
    %v458 = vpack.c.b16 %v402, %v401
    %515 = vmatprep.subr.bf16.mxu0 0
    %516 = vmatpush1.bf16.msra.mxu0 %v403
    %517 = vmatprep.subr.bf16.mxu0 0
    %518 = vmatpush1.bf16.msra.mxu0 %v404
    %519 = vmatprep.subr.bf16.mxu0 0
    %520 = vmatpush1.bf16.msra.mxu0 %v405
    %521 = vmatprep.subr.bf16.mxu0 0
    %522 = vmatpush1.bf16.msra.mxu0 %v406
    %523 = vmatprep.subr.bf16.mxu0 0
    %524 = vmatpush1.bf16.msra.mxu0 %v407
    %525 = vmatprep.subr.bf16.mxu0 0
    %526 = vmatpush1.bf16.msra.mxu0 %v408
    %527 = vmatprep.subr.bf16.mxu0 0
    %528 = vmatpush1.bf16.msra.mxu0 %v409
    %529 = vmatprep.subr.bf16.mxu0 0
    %530 = vmatpush1.bf16.msra.mxu0 %v410
    %531 = vmatprep.subr.bf16.mxu0 0
    %532 = vmatpush1.bf16.msra.mxu0 %v411
    %533 = vmatprep.subr.bf16.mxu0 0
    %534 = vmatpush1.bf16.msra.mxu0 %v412
    %535 = vmatprep.subr.bf16.mxu0 0
    %536 = vmatpush1.bf16.msra.mxu0 %v413
    %537 = vmatprep.subr.bf16.mxu0 0
    %538 = vmatpush1.bf16.msra.mxu0 %v414
    %539 = vmatprep.subr.bf16.mxu0 0
    %540 = vmatpush1.bf16.msra.mxu0 %v415
    %541 = vmatprep.subr.bf16.mxu0 0
    %542 = vmatpush1.bf16.msra.mxu0 %v416
    %543 = vmatprep.subr.bf16.mxu0 0
    %544 = vmatpush1.bf16.msra.mxu0 %v417
    %545 = vmatprep.subr.bf16.mxu0 0
    %546 = vmatpush1.bf16.msra.mxu0 %v418
    %547 = vmatprep.mubr.bf16.mxu0 %v166
    %548 = vmatmul.mubr.bf16.gmra.mrb[0].mxu0 %v165
    %v549 = vpop.f32.mrb[0].mxu0
    %v550 = vadd.f32 %v153, %v549
    %v551 = vpop.f32.mrb[0].mxu0
    %v552 = vpop.f32.mrb[0].mxu0
    %v553 = vpop.f32.mrb[0].mxu0
    %554 = vdwg.mxu0
    %555 = vmatprep.subr.bf16.mxu0 0
    %556 = vmatpush1.bf16.msra.mxu0 %v419
    %557 = vmatprep.subr.bf16.mxu0 0
    %558 = vmatpush1.bf16.msra.mxu0 %v420
    %559 = vmatprep.subr.bf16.mxu0 0
    %560 = vmatpush1.bf16.msra.mxu0 %v421
    %561 = vmatprep.subr.bf16.mxu0 0
    %562 = vmatpush1.bf16.msra.mxu0 %v422
    %563 = vmatprep.subr.bf16.mxu0 0
    %564 = vmatpush1.bf16.msra.mxu0 %v423
    %565 = vmatprep.subr.bf16.mxu0 0
    %566 = vmatpush1.bf16.msra.mxu0 %v424
    %567 = vmatprep.subr.bf16.mxu0 0
    %568 = vmatpush1.bf16.msra.mxu0 %v425
    %569 = vmatprep.subr.bf16.mxu0 0
    %570 = vmatpush1.bf16.msra.mxu0 %v426
    %571 = vmatprep.subr.bf16.mxu0 0
    %572 = vmatpush1.bf16.msra.mxu0 %v427
    %573 = vmatprep.subr.bf16.mxu0 0
    %574 = vmatpush1.bf16.msra.mxu0 %v428
    %575 = vmatprep.subr.bf16.mxu0 0
    %576 = vmatpush1.bf16.msra.mxu0 %v429
    %577 = vmatprep.subr.bf16.mxu0 0
    %578 = vmatpush1.bf16.msra.mxu0 %v430
    %579 = vmatprep.subr.bf16.mxu0 0
    %580 = vmatpush1.bf16.msra.mxu0 %v431
    %581 = vmatprep.subr.bf16.mxu0 0
    %582 = vmatpush1.bf16.msra.mxu0 %v432
    %583 = vmatprep.subr.bf16.mxu0 0
    %584 = vmatpush1.bf16.msra.mxu0 %v433
    %585 = vmatprep.subr.bf16.mxu0 0
    %586 = vmatpush1.bf16.msra.mxu0 %v434
    %587 = vmatprep.mubr.bf16.mxu0 %v168
    %588 = vmatmul.mubr.bf16.gmra.mrb[0].mxu0 %v167
    %v589 = vpop.f32.mrb[0].mxu0
    %v590 = vadd.f32 %v550, %v589
    %v591 = vpop.f32.mrb[0].mxu0
    %v592 = vpop.f32.mrb[0].mxu0
    %v593 = vpop.f32.mrb[0].mxu0
    %594 = vdwg.mxu0
    %595 = vmatprep.subr.bf16.mxu0 0
    %596 = vmatpush1.bf16.msra.mxu0 %v435
    %597 = vmatprep.subr.bf16.mxu0 0
    %598 = vmatpush1.bf16.msra.mxu0 %v436
    %599 = vmatprep.subr.bf16.mxu0 0
    %600 = vmatpush1.bf16.msra.mxu0 %v437
    %601 = vmatprep.subr.bf16.mxu0 0
    %602 = vmatpush1.bf16.msra.mxu0 %v438
    %603 = vmatprep.subr.bf16.mxu0 0
    %604 = vmatpush1.bf16.msra.mxu0 %v439
    %605 = vmatprep.subr.bf16.mxu0 0
    %606 = vmatpush1.bf16.msra.mxu0 %v440
    %607 = vmatprep.subr.bf16.mxu0 0
    %608 = vmatpush1.bf16.msra.mxu0 %v441
    %609 = vmatprep.subr.bf16.mxu0 0
    %610 = vmatpush1.bf16.msra.mxu0 %v442
    %611 = vmatprep.subr.bf16.mxu0 0
    %612 = vmatpush1.bf16.msra.mxu0 %v443
    %613 = vmatprep.subr.bf16.mxu0 0
    %614 = vmatpush1.bf16.msra.mxu0 %v444
    %615 = vmatprep.subr.bf16.mxu0 0
    %616 = vmatpush1.bf16.msra.mxu0 %v445
    %617 = vmatprep.subr.bf16.mxu0 0
    %618 = vmatpush1.bf16.msra.mxu0 %v446
    %619 = vmatprep.subr.bf16.mxu0 0
    %620 = vmatpush1.bf16.msra.mxu0 %v447
    %621 = vmatprep.subr.bf16.mxu0 0
    %622 = vmatpush1.bf16.msra.mxu0 %v448
    %623 = vmatprep.subr.bf16.mxu0 0
    %624 = vmatpush1.bf16.msra.mxu0 %v449
    %625 = vmatprep.subr.bf16.mxu0 0
    %626 = vmatpush1.bf16.msra.mxu0 %v450
    %627 = vmatprep.mubr.bf16.mxu0 %v170
    %628 = vmatmul.mubr.bf16.gmra.mrb[0].mxu0 %v169
    %v629 = vpop.f32.mrb[0].mxu0
    %v630 = vadd.f32 %v590, %v629
    %v631 = vpop.f32.mrb[0].mxu0
    %v632 = vpop.f32.mrb[0].mxu0
    %v633 = vpop.f32.mrb[0].mxu0
    %634 = vdwg.mxu0
    %635 = vmatprep.subr.bf16.mxu0 0
    %636 = vmatpush1.bf16.msra.mxu0 %v451
    %637 = vmatprep.subr.bf16.mxu0 0
    %638 = vmatpush1.bf16.msra.mxu0 %v452
    %639 = vmatprep.subr.bf16.mxu0 0
    %640 = vmatpush1.bf16.msra.mxu0 %v453
    %641 = vmatprep.subr.bf16.mxu0 0
    %642 = vmatpush1.bf16.msra.mxu0 %v454
    %643 = vmatprep.subr.bf16.mxu0 0
    %644 = vmatpush1.bf16.msra.mxu0 %v455
    %645 = vmatprep.subr.bf16.mxu0 0
    %646 = vmatpush1.bf16.msra.mxu0 %v456
    %647 = vmatprep.subr.bf16.mxu0 0
    %648 = vmatpush1.bf16.msra.mxu0 %v457
    %649 = vmatprep.subr.bf16.mxu0 0
    %650 = vmatpush1.bf16.msra.mxu0 %v458
    %651 = vmatprep.subr.bf16.mxu0 0
    %652 = vmatpush1.bf16.msra.mxu0 0
    %653 = vmatprep.subr.bf16.mxu0 0
    %654 = vmatpush1.bf16.msra.mxu0 0
    %655 = vmatprep.subr.bf16.mxu0 0
    %656 = vmatpush1.bf16.msra.mxu0 0
    %657 = vmatprep.subr.bf16.mxu0 0
    %658 = vmatpush1.bf16.msra.mxu0 0
    %659 = vmatprep.subr.bf16.mxu0 0
    %660 = vmatpush1.bf16.msra.mxu0 0
    %661 = vmatprep.subr.bf16.mxu0 0
    %662 = vmatpush1.bf16.msra.mxu0 0
    %663 = vmatprep.subr.bf16.mxu0 0
    %664 = vmatpush1.bf16.msra.mxu0 0
    %665 = vmatprep.subr.bf16.mxu0 0
    %666 = vmatpush1.bf16.msra.mxu0 0
    %667 = vmatprep.mubr.bf16.mxu0 0
    %668 = vmatmul.mubr.bf16.gmra.mrb[0].mxu0 %v171
    %v669 = vpop.f32.mrb[0].mxu0
    %v670 = vadd.f32 %v630, %v669
    %v671 = vpop.f32.mrb[0].mxu0
    %v672 = vpop.f32.mrb[0].mxu0
    %v673 = vpop.f32.mrb[0].mxu0
    %674 = vdwg.mxu0
    %v675 = vmax.f32 %v670, 0.0
    %v676 = vpack.c.bf16 %v675, %v675
    %v677 = vld [vmem:[#allocation2] sm:$0xf]
    %v678 = vld [vmem:[#allocation2 + $0x4] sm:$0xf]
    %v679 = vld [vmem:[#allocation2 + $0x8] sm:$0xf]
    %v680 = vld [vmem:[#allocation2 + $0xc] sm:$0xf]
    %v681 = vld [vmem:[#allocation2 + $0x10] sm:$0xf]
    %v682 = vld [vmem:[#allocation2 + $0x14] sm:$0xf]
    %v683 = vld [vmem:[#allocation2 + $0x18] sm:$0xf]
    %v684 = vld [vmem:[#allocation2 + $0x1c] sm:$0xf]
    %v685 = vld [vmem:[#allocation2 + $0x20] sm:$0xf]
    %v686 = vld [vmem:[#allocation2 + $0x24] sm:$0xf]
    %v687 = vld [vmem:[#allocation2 + $0x28] sm:$0xf]
    %v688 = vld [vmem:[#allocation2 + $0x2c] sm:$0xf]
    %v689 = vld [vmem:[#allocation2 + $0x30] sm:$0xf]
    %v690 = vld [vmem:[#allocation2 + $0x34] sm:$0xf]
    %v691 = vld [vmem:[#allocation2 + $0x38] sm:$0xf]
    %v692 = vld [vmem:[#allocation2 + $0x3c] sm:$0xf]
    %v693 = vld [vmem:[%s3 + $0x1] sm:$0x1]
    %v694 = vlaneseq
    %v695 = vshrl.u32 %v694, 7
    %v696 = vsub.s32 0, %v695
    %v697 = vrot.slane %v693, %v696
    %v714 = vunpack.c.l.b16 %v677
    %v715 = vunpack.c.l.b16 %v678
    %v716 = vunpack.c.l.b16 %v679
    %v717 = vunpack.c.l.b16 %v680
    %v718 = vunpack.c.l.b16 %v681
    %v719 = vunpack.c.l.b16 %v682
    %v720 = vunpack.c.l.b16 %v683
    %v721 = vunpack.c.l.b16 %v684
    %v722 = vunpack.c.l.b16 %v685
    %v723 = vunpack.c.l.b16 %v686
    %v724 = vunpack.c.l.b16 %v687
    %v725 = vunpack.c.l.b16 %v688
    %v726 = vunpack.c.l.b16 %v689
    %v727 = vunpack.c.l.b16 %v690
    %v728 = vunpack.c.l.b16 %v691
    %v729 = vunpack.c.l.b16 %v692
    %v730 = vpack.c.b16 %v715, %v714
    %v731 = vpack.c.b16 %v717, %v716
    %v732 = vpack.c.b16 %v719, %v718
    %v733 = vpack.c.b16 %v721, %v720
    %v734 = vpack.c.b16 %v723, %v722
    %v735 = vpack.c.b16 %v725, %v724
    %v736 = vpack.c.b16 %v727, %v726
    %v737 = vpack.c.b16 %v729, %v728
    %746 = vmatprep.subr.bf16.mxu0 0
    %747 = vmatpush1.bf16.msra.mxu0 %v730
    %748 = vmatprep.subr.bf16.mxu0 0
    %749 = vmatpush1.bf16.msra.mxu0 %v731
    %750 = vmatprep.subr.bf16.mxu0 0
    %751 = vmatpush1.bf16.msra.mxu0 %v732
    %752 = vmatprep.subr.bf16.mxu0 0
    %753 = vmatpush1.bf16.msra.mxu0 %v733
    %754 = vmatprep.subr.bf16.mxu0 0
    %755 = vmatpush1.bf16.msra.mxu0 %v734
    %756 = vmatprep.subr.bf16.mxu0 0
    %757 = vmatpush1.bf16.msra.mxu0 %v735
    %758 = vmatprep.subr.bf16.mxu0 0
    %759 = vmatpush1.bf16.msra.mxu0 %v736
    %760 = vmatprep.subr.bf16.mxu0 0
    %761 = vmatpush1.bf16.msra.mxu0 %v737
    %762 = vmatprep.subr.bf16.mxu0 0
    %763 = vmatpush1.bf16.msra.mxu0 0
    %764 = vmatprep.subr.bf16.mxu0 0
    %765 = vmatpush1.bf16.msra.mxu0 0
    %766 = vmatprep.subr.bf16.mxu0 0
    %767 = vmatpush1.bf16.msra.mxu0 0
    %768 = vmatprep.subr.bf16.mxu0 0
    %769 = vmatpush1.bf16.msra.mxu0 0
    %770 = vmatprep.subr.bf16.mxu0 0
    %771 = vmatpush1.bf16.msra.mxu0 0
    %772 = vmatprep.subr.bf16.mxu0 0
    %773 = vmatpush1.bf16.msra.mxu0 0
    %774 = vmatprep.subr.bf16.mxu0 0
    %775 = vmatpush1.bf16.msra.mxu0 0
    %776 = vmatprep.subr.bf16.mxu0 0
    %777 = vmatpush1.bf16.msra.mxu0 0
    %778 = vmatprep.mubr.bf16.mxu0 0
    %779 = vmatmul.mubr.bf16.gmra.mrb[0].mxu0 %v676
    %v780 = vpop.f32.mrb[0].mxu0
    %v781 = vadd.f32 %v697, %v780
    %v782 = vpop.f32.mrb[0].mxu0
    %v783 = vpop.f32.mrb[0].mxu0
    %v784 = vpop.f32.mrb[0].mxu0
    %785 = vdwg.mxu0
    %v786 = vmax.f32 %v781, 0.0
    %v787 = vpack.c.bf16 %v786, %v786
    %s788 = scalar_lea.vmem [#allocation2], 64
    %v789 = vld [vmem:[%s788] sm:$0xf]
    %v790 = vld [vmem:[%s788 + $0x4] sm:$0xf]
    %v791 = vld [vmem:[%s788 + $0x8] sm:$0xf]
    %v792 = vld [vmem:[%s788 + $0xc] sm:$0xf]
    %v793 = vld [vmem:[%s788 + $0x10] sm:$0xf]
    %v794 = vld [vmem:[%s788 + $0x14] sm:$0xf]
    %v795 = vld [vmem:[%s788 + $0x18] sm:$0xf]
    %v796 = vld [vmem:[%s788 + $0x1c] sm:$0xf]
    %v797 = vld [vmem:[%s788 + $0x20] sm:$0xf]
    %v798 = vld [vmem:[%s788 + $0x24] sm:$0xf]
    %v799 = vld [vmem:[%s788 + $0x28] sm:$0xf]
    %v800 = vld [vmem:[%s788 + $0x2c] sm:$0xf]
    %v801 = vld [vmem:[%s788 + $0x30] sm:$0xf]
    %v802 = vld [vmem:[%s788 + $0x34] sm:$0xf]
    %v803 = vld [vmem:[%s788 + $0x38] sm:$0xf]
    %v804 = vld [vmem:[%s788 + $0x3c] sm:$0xf]
    %v805 = vld [vmem:[%s3 + $0x2] sm:$0x1]
    %v806 = vlaneseq
    %v807 = vshrl.u32 %v806, 7
    %v808 = vsub.s32 0, %v807
    %v809 = vrot.slane %v805, %v808
    %v826 = vunpack.c.l.b16 %v789
    %v827 = vunpack.c.l.b16 %v790
    %v828 = vunpack.c.l.b16 %v791
    %v829 = vunpack.c.l.b16 %v792
    %v830 = vunpack.c.l.b16 %v793
    %v831 = vunpack.c.l.b16 %v794
    %v832 = vunpack.c.l.b16 %v795
    %v833 = vunpack.c.l.b16 %v796
    %v834 = vunpack.c.l.b16 %v797
    %v835 = vunpack.c.l.b16 %v798
    %v836 = vunpack.c.l.b16 %v799
    %v837 = vunpack.c.l.b16 %v800
    %v838 = vunpack.c.l.b16 %v801
    %v839 = vunpack.c.l.b16 %v802
    %v840 = vunpack.c.l.b16 %v803
    %v841 = vunpack.c.l.b16 %v804
    %v842 = vpack.c.b16 %v827, %v826
    %v843 = vpack.c.b16 %v829, %v828
    %v844 = vpack.c.b16 %v831, %v830
    %v845 = vpack.c.b16 %v833, %v832
    %v846 = vpack.c.b16 %v835, %v834
    %v847 = vpack.c.b16 %v837, %v836
    %v848 = vpack.c.b16 %v839, %v838
    %v849 = vpack.c.b16 %v841, %v840
    %858 = vmatprep.subr.bf16.mxu0 0
    %859 = vmatpush1.bf16.msra.mxu0 %v842
    %860 = vmatprep.subr.bf16.mxu0 0
    %861 = vmatpush1.bf16.msra.mxu0 %v843
    %862 = vmatprep.subr.bf16.mxu0 0
    %863 = vmatpush1.bf16.msra.mxu0 %v844
    %864 = vmatprep.subr.bf16.mxu0 0
    %865 = vmatpush1.bf16.msra.mxu0 %v845
    %866 = vmatprep.subr.bf16.mxu0 0
    %867 = vmatpush1.bf16.msra.mxu0 %v846
    %868 = vmatprep.subr.bf16.mxu0 0
    %869 = vmatpush1.bf16.msra.mxu0 %v847
    %870 = vmatprep.subr.bf16.mxu0 0
    %871 = vmatpush1.bf16.msra.mxu0 %v848
    %872 = vmatprep.subr.bf16.mxu0 0
    %873 = vmatpush1.bf16.msra.mxu0 %v849
    %874 = vmatprep.subr.bf16.mxu0 0
    %875 = vmatpush1.bf16.msra.mxu0 0
    %876 = vmatprep.subr.bf16.mxu0 0
    %877 = vmatpush1.bf16.msra.mxu0 0
    %878 = vmatprep.subr.bf16.mxu0 0
    %879 = vmatpush1.bf16.msra.mxu0 0
    %880 = vmatprep.subr.bf16.mxu0 0
    %881 = vmatpush1.bf16.msra.mxu0 0
    %882 = vmatprep.subr.bf16.mxu0 0
    %883 = vmatpush1.bf16.msra.mxu0 0
    %884 = vmatprep.subr.bf16.mxu0 0
    %885 = vmatpush1.bf16.msra.mxu0 0
    %886 = vmatprep.subr.bf16.mxu0 0
    %887 = vmatpush1.bf16.msra.mxu0 0
    %888 = vmatprep.subr.bf16.mxu0 0
    %889 = vmatpush1.bf16.msra.mxu0 0
    %890 = vmatprep.mubr.bf16.mxu0 0
    %891 = vmatmul.mubr.bf16.gmra.mrb[0].mxu0 %v787
    %v892 = vpop.f32.mrb[0].mxu0
    %v893 = vadd.f32 %v809, %v892
    %v894 = vpop.f32.mrb[0].mxu0
    %v895 = vpop.f32.mrb[0].mxu0
    %v896 = vpop.f32.mrb[0].mxu0
    %897 = vdwg.mxu0
    %898 = vmax.xlane.f32.xlu0 %v893
    %v899 = vpop.xlane.xlu0 %898
    %v900 = vsub.f32 %v893, %v899
    %v901 = vmul.f32 %v900, 1.442695
    %v902 = vpow.pop %v901
    %903 = vadd.xlane.f32.xlu0 %v902
    %v904 = vpop.xlane.xlu0 %903
    %v905 = vlog2.pop %v904
    %v906 = vmul.f32 %v905, 0.6931472
    %v907 = vsub.f32 %v900, %v906
    %908 = vst [vmem:[#allocation5] sm:$0xff] %v907
    // Predicated region
    $region22: #{simple_network_forward.1} parent=1 // pred_check
      _
    $region23: #{simple_network_forward.1} parent=1 // pred_check_branch
      %910 = sbr.rel (0) target = $region25
    $region24: #{simple_network_forward.1} parent=1 // pred_region
      %s912 = ssub.s32 128, 128
      %913 = vsyncadd [#allocation4], %s912
      %s915 = sshll.u32 [#allocation5], 4
      %s916 = int_to_ptr.vmem [resolvable:$true] %s915
      %918 = dma.vmem_to_hbm [thread:$0]  %s916, 128, %s4, [#allocation4]
    $region25: #{simple_network_forward.1} parent=1 // pred_fallthru
      _
    // Predicated region
    $region26: #{simple_network_forward.1} parent=1 // pred_check
      _
    $region27: #{simple_network_forward.1} parent=1 // pred_check_branch
      %920 = sbr.rel (0) target = $region29
    $region28: #{simple_network_forward.1} parent=1 // pred_region
      %921 = dma.done [#allocation4], 128
    $region29: #{simple_network_forward.1} parent=1 // pred_fallthru
      _
    %922 = vsyncpa [#allocation3], 1
    %923 = vsyncpa [#allocation4], 1

</llo_original>
